<compile_context>
chip_gen: v7x
topology: tpu7x:2x2x1
jax: 0.10.0
libtpu: 0.0.40
codegen_flags: <defaults>
</compile_context>

<pallas_src>
import functools

import jax
import jax.numpy as jnp
from jax import lax
from jax.experimental import pallas as pl
from jax.experimental.pallas import tpu as pltpu

_LANE = 128
_SUBLANE = 8


def _round_up(x, n):
    return (x + n - 1) // n * n


def _layernorm_head(h, gamma_ref, beta_ref, w_lin_ref, b_lin_ref, o_ref, *,
                    eps, n_valid, n_pad_cols):
    """LayerNorm (over the true in_features) -> Dropout(p=0, id) -> Linear head."""
    inv_n = 1.0 / float(n_valid)
    mean = jnp.sum(h, axis=-1, keepdims=True) * inv_n
    centered = h - mean
    sumsq = jnp.sum(centered * centered, axis=-1, keepdims=True)
    if n_pad_cols:
        # Padded columns of h are exactly zero, so `centered` there equals -mean.
        # Remove their contribution with a scalar correction (no iota/where mask).
        sumsq = sumsq - float(n_pad_cols) * (mean * mean)
    inv = lax.rsqrt(sumsq * inv_n + eps)
    # gamma/beta are zero-padded -> padded columns of ln are exactly zero.
    ln = centered * inv * gamma_ref[...] + beta_ref[...]
    # Dropout(p=0.0): identity.
    out = jnp.dot(ln.astype(w_lin_ref.dtype), w_lin_ref[...],
                  preferred_element_type=jnp.float32)
    o_ref[...] = (out + b_lin_ref[...]).astype(o_ref.dtype)


def _resident_kernel(x_ref, w_enc_ref, b_enc_ref, gamma_ref, beta_ref,
                     w_lin_ref, b_lin_ref, o_ref, *, eps, n_valid, n_pad_cols):
    """Grid = (M tiles,).  Full W_enc / W_lin resident in VMEM; no accumulator."""
    h = jnp.dot(x_ref[...], w_enc_ref[...],
                preferred_element_type=jnp.float32) + b_enc_ref[...]
    _layernorm_head(h, gamma_ref, beta_ref, w_lin_ref, b_lin_ref, o_ref,
                    eps=eps, n_valid=n_valid, n_pad_cols=n_pad_cols)


def _kstream_kernel(x_ref, w_enc_ref, b_enc_ref, gamma_ref, beta_ref,
                    w_lin_ref, b_lin_ref, o_ref, acc_ref, *,
                    eps, n_valid, n_pad_cols):
    """Grid = (M tiles, K tiles over hidden).  K is the (last) reduction axis."""
    k = pl.program_id(1)

    @pl.when(k == 0)
    def _init():
        # Seed the accumulator with the encoder bias instead of zeros
        # (saves a full VPU pass over the (block_m, in_pad) buffer later).
        acc_ref[...] = jnp.broadcast_to(b_enc_ref[...], acc_ref.shape)

    acc_ref[...] += jnp.dot(x_ref[...], w_enc_ref[...],
                            preferred_element_type=jnp.float32)

    @pl.when(k == pl.num_programs(1) - 1)
    def _finalize():
        _layernorm_head(acc_ref[...], gamma_ref, beta_ref, w_lin_ref, b_lin_ref,
                        o_ref, eps=eps, n_valid=n_valid, n_pad_cols=n_pad_cols)


def encoder_classifier(x, params, *, eps=1e-5, block_m=None, block_k=None,
                       mxu_dtype=jnp.bfloat16, out_dtype=jnp.float32):
    """x: [batch, seq, hidden] -> [batch, seq, out_features]."""
    w_enc, b_enc, gamma, beta, w_lin, b_lin = params
    batch, seq, hidden = x.shape
    in_features = w_enc.shape[1]
    out_features = w_lin.shape[1]
    m = batch * seq

    # ---- lane-dense padded feature dims (multiples of 128 only) ----
    in_pad = _round_up(in_features, _LANE)
    out_pad = _round_up(out_features, _LANE)
    hidden_pad = _round_up(hidden, _LANE)
    n_pad_cols = in_pad - in_features

    itm = jnp.dtype(mxu_dtype).itemsize
    otm = jnp.dtype(out_dtype).itemsize

    # ---- generation-aware VMEM budget ----
    try:
        vmem_cap = int(pltpu.get_tpu_info().vmem_capacity_bytes)
    except Exception:
        vmem_cap = 64 << 20                      # conservative (v7x physical VMEM)
    vmem_budget = int(0.8 * vmem_cap)            # leave compiler headroom

    param_bytes = 4 * (3 * in_pad + out_pad)     # b_enc, gamma, beta, b_lin (f32)
    w_enc_bytes = hidden_pad * in_pad * itm
    w_lin_bytes = in_pad * out_pad * itm

    # ---- M padding: multiple of 8 only (no round-up to block_m) ----
    m_pad = _round_up(m, _SUBLANE)

    # ---- resident-path feasibility (full W_enc + W_lin kept in VMEM) ----
    # Weights budgeted at 2x in case single-buffering (pl.Buffered(1)) is unavailable.
    fixed_resident = 2 * (w_enc_bytes + w_lin_bytes + param_bytes)
    row_bytes_resident = (2 * hidden_pad * itm     # x tile (double-buffered)
                          + 2 * out_pad * otm      # out tile (double-buffered)
                          + 3 * in_pad * 4)        # f32 epilogue intermediates
    resident = fixed_resident + _SUBLANE * row_bytes_resident <= vmem_budget

    # ---- K tiling (fallback path only): 128-multiple divisor of hidden_pad ----
    if block_k is None:
        q = hidden_pad // _LANE
        d = 1
        for cand in range(min(q, 4), 0, -1):       # block_k <= 512
            if q % cand == 0:
                d = cand
                break
        block_k = d * _LANE
    else:
        block_k = _round_up(int(block_k), _LANE)
        hidden_pad = _round_up(hidden_pad, block_k)   # user-chosen block_k: pad K

    if resident:
        fixed = fixed_resident
        row_bytes = row_bytes_resident
    else:
        fixed = (2 * block_k * in_pad * itm            # W_enc K tiles (double-buffered)
                 + 2 * (w_lin_bytes + param_bytes))
        row_bytes = (2 * block_k * itm                 # x tile
                     + 2 * out_pad * otm               # out tile
                     + in_pad * 4                      # f32 accumulator scratch
                     + 2 * in_pad * 4)                 # epilogue intermediates

    # ---- M tiling: as big as the budget allows; >=2 tiles when there is work ----
    if block_m is None:
        max_rows = max((vmem_budget - fixed) // row_bytes, _SUBLANE)
        bm = min(m_pad, 1024, int(max_rows))
        bm = max((bm // _SUBLANE) * _SUBLANE, _SUBLANE)
        if m_pad > 256 and bm >= m_pad:
            bm = _round_up((m_pad + 1) // 2, _SUBLANE)   # >=2 tiles for dual-TC (v7x)
        block_m = bm
    else:
        block_m = max((int(block_m) // _SUBLANE) * _SUBLANE, _SUBLANE)
    block_m = min(block_m, m_pad)

    grid_m = pl.cdiv(m_pad, block_m)
    grid_k = hidden_pad // block_k

    # ---- pad & cast operands (zero padding keeps the math exact) ----
    x2d = x.reshape(m, hidden)
    if (m_pad, hidden_pad) != (m, hidden):
        x2d = jnp.pad(x2d, ((0, m_pad - m), (0, hidden_pad - hidden)))
    x2d = x2d.astype(mxu_dtype)

    def _pad2(a, r, c):
        if a.shape != (r, c):
            a = jnp.pad(a, ((0, r - a.shape[0]), (0, c - a.shape[1])))
        return a

    def _pad_row(a, c):
        if a.shape[0] != c:
            a = jnp.pad(a, (0, c - a.shape[0]))
        return a.reshape(1, c)

    w_enc_p = _pad2(w_enc, hidden_pad, in_pad).astype(mxu_dtype)
    w_lin_p = _pad2(w_lin, in_pad, out_pad).astype(mxu_dtype)
    b_enc_p = _pad_row(b_enc, in_pad).astype(jnp.float32)
    gamma_p = _pad_row(gamma, in_pad).astype(jnp.float32)
    beta_p = _pad_row(beta, in_pad).astype(jnp.float32)
    b_lin_p = _pad_row(b_lin, out_pad).astype(jnp.float32)

    # ---- VMEM limit & cost estimate (reflects real W_enc traffic per path) ----
    working_set = fixed + block_m * row_bytes
    vmem_limit = int(min(max(working_set + (8 << 20), 32 << 20), vmem_budget))

    w_enc_reads = 1 if resident else grid_m            # K-streaming re-reads W_enc per M tile
    cost = pl.CostEstimate(
        flops=2 * m * hidden * in_features + 2 * m * in_features * out_features,
        transcendentals=m,
        bytes_accessed=(x2d.size * itm
                        + w_enc_reads * w_enc_p.size * itm
                        + w_lin_p.size * itm
                        + 4 * (b_enc_p.size + gamma_p.size + beta_p.size + b_lin_p.size)
                        + m_pad * out_pad * otm),
    )

    def _run(single_buffer_invariants):
        inv_kw = {"pipeline_mode": pl.Buffered(1)} if single_buffer_invariants else {}
        if resident:
            kernel = functools.partial(_resident_kernel, eps=eps,
                                       n_valid=in_features, n_pad_cols=n_pad_cols)
            grid = (grid_m,)
            in_specs = [
                pl.BlockSpec((block_m, hidden_pad), lambda i: (i, 0)),             # x rows
                pl.BlockSpec((hidden_pad, in_pad), lambda i: (0, 0), **inv_kw),    # W_enc
                pl.BlockSpec((1, in_pad), lambda i: (0, 0), **inv_kw),             # b_enc
                pl.BlockSpec((1, in_pad), lambda i: (0, 0), **inv_kw),             # gamma
                pl.BlockSpec((1, in_pad), lambda i: (0, 0), **inv_kw),             # beta
                pl.BlockSpec((in_pad, out_pad), lambda i: (0, 0), **inv_kw),       # W_lin
                pl.BlockSpec((1, out_pad), lambda i: (0, 0), **inv_kw),            # b_lin
            ]
            out_specs = pl.BlockSpec((block_m, out_pad), lambda i: (i, 0))
            scratch = []
            semantics = ("parallel",)
        else:
            kernel = functools.partial(_kstream_kernel, eps=eps,
                                       n_valid=in_features, n_pad_cols=n_pad_cols)
            grid = (grid_m, grid_k)
            in_specs = [
                pl.BlockSpec((block_m, block_k), lambda i, k: (i, k)),             # x rows
                pl.BlockSpec((block_k, in_pad), lambda i, k: (k, 0)),              # W_enc
                pl.BlockSpec((1, in_pad), lambda i, k: (0, 0), **inv_kw),          # b_enc
                pl.BlockSpec((1, in_pad), lambda i, k: (0, 0), **inv_kw),          # gamma
                pl.BlockSpec((1, in_pad), lambda i, k: (0, 0), **inv_kw),          # beta
                pl.BlockSpec((in_pad, out_pad), lambda i, k: (0, 0), **inv_kw),    # W_lin
                pl.BlockSpec((1, out_pad), lambda i, k: (0, 0), **inv_kw),         # b_lin
            ]
            out_specs = pl.BlockSpec((block_m, out_pad), lambda i, k: (i, 0))
            scratch = [pltpu.VMEM((block_m, in_pad), jnp.float32)]
            semantics = ("parallel", "arbitrary")

        return pl.pallas_call(
            kernel,
            out_shape=jax.ShapeDtypeStruct((m_pad, out_pad), out_dtype),
            grid_spec=pltpu.PrefetchScalarGridSpec(
                num_scalar_prefetch=0,
                grid=grid,
                in_specs=in_specs,
                out_specs=out_specs,
                scratch_shapes=scratch),
            compiler_params=pltpu.CompilerParams(
                dimension_semantics=semantics,
                vmem_limit_bytes=vmem_limit),
            cost_estimate=cost,
        )(x2d, w_enc_p, b_enc_p, gamma_p, beta_p, w_lin_p, b_lin_p)

    try:
        out2d = _run(True)     # single-buffer the grid-invariant operands
    except Exception:
        out2d = _run(False)    # fallback if pl.Buffered(1) is not supported

    out2d = out2d[:m, :out_features]
    return out2d.reshape(batch, seq, out_features)


def init_params(key, hidden, in_features, out_features):
    """Deterministic synthetic parameters (matches shapes implied by __init__)."""
    k_enc, k_lin = jax.random.split(key)
    # Stand-in encoder: Linear(hidden -> in_features); stored pre-transposed (in, out).
    w_enc = jax.random.normal(k_enc, (hidden, in_features), jnp.float32) * 0.05
    b_enc = jnp.linspace(-0.1, 0.1, in_features, dtype=jnp.float32)
    # nn.LayerNorm(in_features): gamma=1, beta=0 at init.
    gamma = jnp.ones((in_features,), jnp.float32)
    beta = jnp.zeros((in_features,), jnp.float32)
    # nn.Linear(in_features, out_features): weight (out, in) -> stored (in, out).
    w_lin = jax.random.normal(k_lin, (in_features, out_features), jnp.float32) * 0.05
    b_lin = jnp.linspace(-0.05, 0.05, out_features, dtype=jnp.float32)
    return (w_enc, b_enc, gamma, beta, w_lin, b_lin)


def reference(x, params, eps=1e-5):
    """Pure-JAX f32 reference for correctness."""
    w_enc, b_enc, gamma, beta, w_lin, b_lin = params
    h = x @ w_enc + b_enc
    mean = jnp.mean(h, axis=-1, keepdims=True)
    var = jnp.mean((h - mean) ** 2, axis=-1, keepdims=True)
    ln = (h - mean) / jnp.sqrt(var + eps) * gamma + beta
    return ln @ w_lin + b_lin


if __name__ == "__main__":
    key = jax.random.PRNGKey(0)
    k_x, k_p = jax.random.split(key)

    batch, seq, hidden = 2, 8, 32
    in_features, out_features = 32, 16

    x = jax.random.normal(k_x, (batch, seq, hidden), jnp.float32)
    params = init_params(k_p, hidden, in_features, out_features)

    out = encoder_classifier(x, params)
    out = jax.block_until_ready(out)

    ref = reference(x, params)
    assert out.shape == (batch, seq, out_features), out.shape
    # bf16 MXU operands (f32 accumulation / LN math) -> bf16-level tolerance.
    assert jnp.allclose(out, ref, atol=2e-2, rtol=2e-2), \
        f"max abs err {jnp.max(jnp.abs(out - ref))}"

    print("KERNEL_OK")
</pallas_src>

<mosaic_0001>
module attributes {stable_mosaic.version = 11 : i64} {
  func.func @_resident_kernel(%arg0: i32, %arg1: memref<16x128xbf16, #tpu.memory_space<vmem>>, %arg2: memref<128x128xbf16, #tpu.memory_space<vmem>>, %arg3: memref<1x128xf32, #tpu.memory_space<vmem>>, %arg4: memref<1x128xf32, #tpu.memory_space<vmem>>, %arg5: memref<1x128xf32, #tpu.memory_space<vmem>>, %arg6: memref<128x128xbf16, #tpu.memory_space<vmem>>, %arg7: memref<1x128xf32, #tpu.memory_space<vmem>>, %arg8: memref<16x128xf32, #tpu.memory_space<vmem>>) attributes {dimension_semantics = [#tpu.dimension_semantics<parallel>], iteration_bounds = array<i64: 1>, scalar_prefetch = 0 : i64, scratch_operands = 0 : i64, tpu.core_type = #tpu.core_type<tc>, window_params = [{transform_indices = @transform_0, window_bounds = array<i64: 16, 128>}, {pipeline_mode = #tpu.pipeline_mode<synchronous>, transform_indices = @transform_1, window_bounds = array<i64: 128, 128>}, {pipeline_mode = #tpu.pipeline_mode<synchronous>, transform_indices = @transform_2, window_bounds = array<i64: 1, 128>}, {pipeline_mode = #tpu.pipeline_mode<synchronous>, transform_indices = @transform_3, window_bounds = array<i64: 1, 128>}, {pipeline_mode = #tpu.pipeline_mode<synchronous>, transform_indices = @transform_4, window_bounds = array<i64: 1, 128>}, {pipeline_mode = #tpu.pipeline_mode<synchronous>, transform_indices = @transform_5, window_bounds = array<i64: 128, 128>}, {pipeline_mode = #tpu.pipeline_mode<synchronous>, transform_indices = @transform_6, window_bounds = array<i64: 1, 128>}, {transform_indices = @transform_7, window_bounds = array<i64: 16, 128>}]} {
    %c0 = arith.constant 0 : index
    %c0_0 = arith.constant 0 : index
    %0 = vector.load %arg1[%c0, %c0_0] : memref<16x128xbf16, #tpu.memory_space<vmem>>, vector<16x128xbf16>
    %c0_1 = arith.constant 0 : index
    %c0_2 = arith.constant 0 : index
    %1 = vector.load %arg2[%c0_1, %c0_2] : memref<128x128xbf16, #tpu.memory_space<vmem>>, vector<128x128xbf16>
    %cst = arith.constant dense<0.000000e+00> : vector<16x128xf32>
    %2 = tpu.matmul %0, %1, %cst {dimension_numbers = #tpu.dot_dimension_numbers<[1], [0], [0], [1], [0, 0, 1, 1], [], []>} : vector<16x128xbf16>, vector<128x128xbf16>, vector<16x128xf32> -> vector<16x128xf32>
    %c0_3 = arith.constant 0 : index
    %c0_4 = arith.constant 0 : index
    %3 = vector.load %arg3[%c0_3, %c0_4] : memref<1x128xf32, #tpu.memory_space<vmem>>, vector<1x128xf32>
    %4 = vector.broadcast %3 : vector<1x128xf32> to vector<16x128xf32>
    %5 = arith.addf %2, %4 : vector<16x128xf32>
    %cst_5 = arith.constant dense<0.000000e+00> : vector<16xf32>
    %6 = vector.multi_reduction <add>, %5, %cst_5 [1] : vector<16x128xf32> to vector<16xf32>
    %7 = vector.shape_cast %6 : vector<16xf32> to vector<16x1xf32>
    %cst_6 = arith.constant 3.125000e-02 : f32
    %8 = vector.broadcast %cst_6 : f32 to vector<16x1xf32>
    %9 = arith.mulf %7, %8 : vector<16x1xf32>
    %10 = vector.broadcast %9 : vector<16x1xf32> to vector<16x128xf32>
    %11 = arith.subf %5, %10 : vector<16x128xf32>
    %12 = arith.mulf %11, %11 : vector<16x128xf32>
    %cst_7 = arith.constant dense<0.000000e+00> : vector<16xf32>
    %13 = vector.multi_reduction <add>, %12, %cst_7 [1] : vector<16x128xf32> to vector<16xf32>
    %14 = vector.shape_cast %13 : vector<16xf32> to vector<16x1xf32>
    %15 = arith.mulf %9, %9 : vector<16x1xf32>
    %cst_8 = arith.constant 9.600000e+01 : f32
    %16 = vector.broadcast %cst_8 : f32 to vector<16x1xf32>
    %17 = arith.mulf %16, %15 : vector<16x1xf32>
    %18 = arith.subf %14, %17 : vector<16x1xf32>
    %cst_9 = arith.constant 3.125000e-02 : f32
    %19 = vector.broadcast %cst_9 : f32 to vector<16x1xf32>
    %20 = arith.mulf %18, %19 : vector<16x1xf32>
    %cst_10 = arith.constant 9.99999974E-6 : f32
    %21 = vector.broadcast %cst_10 : f32 to vector<16x1xf32>
    %22 = arith.addf %20, %21 : vector<16x1xf32>
    %23 = math.rsqrt %22 : vector<16x1xf32>
    %24 = vector.broadcast %23 : vector<16x1xf32> to vector<16x128xf32>
    %25 = arith.mulf %11, %24 : vector<16x128xf32>
    %c0_11 = arith.constant 0 : index
    %c0_12 = arith.constant 0 : index
    %26 = vector.load %arg4[%c0_11, %c0_12] : memref<1x128xf32, #tpu.memory_space<vmem>>, vector<1x128xf32>
    %27 = vector.broadcast %26 : vector<1x128xf32> to vector<16x128xf32>
    %28 = arith.mulf %25, %27 : vector<16x128xf32>
    %c0_13 = arith.constant 0 : index
    %c0_14 = arith.constant 0 : index
    %29 = vector.load %arg5[%c0_13, %c0_14] : memref<1x128xf32, #tpu.memory_space<vmem>>, vector<1x128xf32>
    %30 = vector.broadcast %29 : vector<1x128xf32> to vector<16x128xf32>
    %31 = arith.addf %28, %30 : vector<16x128xf32>
    %32 = arith.truncf %31 : vector<16x128xf32> to vector<16x128xbf16>
    %c0_15 = arith.constant 0 : index
    %c0_16 = arith.constant 0 : index
    %33 = vector.load %arg6[%c0_15, %c0_16] : memref<128x128xbf16, #tpu.memory_space<vmem>>, vector<128x128xbf16>
    %cst_17 = arith.constant dense<0.000000e+00> : vector<16x128xf32>
    %34 = tpu.matmul %32, %33, %cst_17 {dimension_numbers = #tpu.dot_dimension_numbers<[1], [0], [0], [1], [0, 0, 1, 1], [], []>} : vector<16x128xbf16>, vector<128x128xbf16>, vector<16x128xf32> -> vector<16x128xf32>
    %c0_18 = arith.constant 0 : index
    %c0_19 = arith.constant 0 : index
    %35 = vector.load %arg7[%c0_18, %c0_19] : memref<1x128xf32, #tpu.memory_space<vmem>>, vector<1x128xf32>
    %36 = vector.broadcast %35 : vector<1x128xf32> to vector<16x128xf32>
    %37 = arith.addf %34, %36 : vector<16x128xf32>
    %c0_20 = arith.constant 0 : index
    %c0_21 = arith.constant 0 : index
    %38 = vector.load %arg8[%c0_20, %c0_21] : memref<16x128xf32, #tpu.memory_space<vmem>>, vector<16x128xf32>
    tpu.vector_store %arg8[%c0_20, %c0_21], %37 {strides = array<i32>} : memref<16x128xf32, #tpu.memory_space<vmem>>, vector<16x128xf32>,
    return
  }
  func.func @transform_0(%arg0: i32) -> (i32, i32) {
    %c0_i32 = arith.constant 0 : i32
    %c0_i32_0 = arith.constant 0 : i32
    return %arg0, %c0_i32 : i32, i32
  }
  func.func @transform_1(%arg0: i32) -> (i32, i32) {
    %c0_i32 = arith.constant 0 : i32
    %c0_i32_0 = arith.constant 0 : i32
    %c0_i32_1 = arith.constant 0 : i32
    return %c0_i32, %c0_i32_0 : i32, i32
  }
  func.func @transform_2(%arg0: i32) -> (i32, i32) {
    %c0_i32 = arith.constant 0 : i32
    %c0_i32_0 = arith.constant 0 : i32
    %c0_i32_1 = arith.constant 0 : i32
    return %c0_i32, %c0_i32_0 : i32, i32
  }
  func.func @transform_3(%arg0: i32) -> (i32, i32) {
    %c0_i32 = arith.constant 0 : i32
    %c0_i32_0 = arith.constant 0 : i32
    %c0_i32_1 = arith.constant 0 : i32
    return %c0_i32, %c0_i32_0 : i32, i32
  }
  func.func @transform_4(%arg0: i32) -> (i32, i32) {
    %c0_i32 = arith.constant 0 : i32
    %c0_i32_0 = arith.constant 0 : i32
    %c0_i32_1 = arith.constant 0 : i32
    return %c0_i32, %c0_i32_0 : i32, i32
  }
  func.func @transform_5(%arg0: i32) -> (i32, i32) {
    %c0_i32 = arith.constant 0 : i32
    %c0_i32_0 = arith.constant 0 : i32
    %c0_i32_1 = arith.constant 0 : i32
    return %c0_i32, %c0_i32_0 : i32, i32
  }
  func.func @transform_6(%arg0: i32) -> (i32, i32) {
    %c0_i32 = arith.constant 0 : i32
    %c0_i32_0 = arith.constant 0 : i32
    %c0_i32_1 = arith.constant 0 : i32
    return %c0_i32, %c0_i32_0 : i32, i32
  }
  func.func @transform_7(%arg0: i32) -> (i32, i32) {
    %c0_i32 = arith.constant 0 : i32
    %c0_i32_0 = arith.constant 0 : i32
    return %arg0, %c0_i32 : i32, i32
  }
}

module attributes {stable_mosaic.version = 11 : i64} {
  func.func @_resident_kernel(%arg0: i32, %arg1: memref<16x128xbf16, #tpu.memory_space<vmem>>, %arg2: memref<128x128xbf16, #tpu.memory_space<vmem>>, %arg3: memref<1x128xf32, #tpu.memory_space<vmem>>, %arg4: memref<1x128xf32, #tpu.memory_space<vmem>>, %arg5: memref<1x128xf32, #tpu.memory_space<vmem>>, %arg6: memref<128x128xbf16, #tpu.memory_space<vmem>>, %arg7: memref<1x128xf32, #tpu.memory_space<vmem>>, %arg8: memref<16x128xf32, #tpu.memory_space<vmem>>) attributes {dimension_semantics = [#tpu.dimension_semantics<parallel>], iteration_bounds = array<i64: 1>, scalar_prefetch = 0 : i64, scratch_operands = 0 : i64, tpu.core_type = #tpu.core_type<tc>, window_params = [{transform_indices = @transform_0, window_bounds = array<i64: 16, 128>}, {pipeline_mode = #tpu.pipeline_mode<synchronous>, transform_indices = @transform_1, window_bounds = array<i64: 128, 128>}, {pipeline_mode = #tpu.pipeline_mode<synchronous>, transform_indices = @transform_2, window_bounds = array<i64: 1, 128>}, {pipeline_mode = #tpu.pipeline_mode<synchronous>, transform_indices = @transform_3, window_bounds = array<i64: 1, 128>}, {pipeline_mode = #tpu.pipeline_mode<synchronous>, transform_indices = @transform_4, window_bounds = array<i64: 1, 128>}, {pipeline_mode = #tpu.pipeline_mode<synchronous>, transform_indices = @transform_5, window_bounds = array<i64: 128, 128>}, {pipeline_mode = #tpu.pipeline_mode<synchronous>, transform_indices = @transform_6, window_bounds = array<i64: 1, 128>}, {transform_indices = @transform_7, window_bounds = array<i64: 16, 128>}]} {
    %c0 = arith.constant 0 : index
    %c0_0 = arith.constant 0 : index
    %0 = vector.load %arg1[%c0, %c0_0] : memref<16x128xbf16, #tpu.memory_space<vmem>>, vector<16x128xbf16>
    %c0_1 = arith.constant 0 : index
    %c0_2 = arith.constant 0 : index
    %1 = vector.load %arg2[%c0_1, %c0_2] : memref<128x128xbf16, #tpu.memory_space<vmem>>, vector<128x128xbf16>
    %cst = arith.constant dense<0.000000e+00> : vector<16x128xf32>
    %2 = tpu.matmul %0, %1, %cst {dimension_numbers = #tpu.dot_dimension_numbers<[1], [0], [0], [1], [0, 0, 1, 1], [], []>} : vector<16x128xbf16>, vector<128x128xbf16>, vector<16x128xf32> -> vector<16x128xf32>
    %c0_3 = arith.constant 0 : index
    %c0_4 = arith.constant 0 : index
    %3 = vector.load %arg3[%c0_3, %c0_4] : memref<1x128xf32, #tpu.memory_space<vmem>>, vector<1x128xf32>
    %4 = vector.broadcast %3 : vector<1x128xf32> to vector<16x128xf32>
    %5 = arith.addf %2, %4 : vector<16x128xf32>
    %cst_5 = arith.constant dense<0.000000e+00> : vector<16xf32>
    %6 = vector.multi_reduction <add>, %5, %cst_5 [1] : vector<16x128xf32> to vector<16xf32>
    %7 = vector.shape_cast %6 : vector<16xf32> to vector<16x1xf32>
    %cst_6 = arith.constant 3.125000e-02 : f32
    %8 = vector.broadcast %cst_6 : f32 to vector<16x1xf32>
    %9 = arith.mulf %7, %8 : vector<16x1xf32>
    %10 = vector.broadcast %9 : vector<16x1xf32> to vector<16x128xf32>
    %11 = arith.subf %5, %10 : vector<16x128xf32>
    %12 = arith.mulf %11, %11 : vector<16x128xf32>
    %cst_7 = arith.constant dense<0.000000e+00> : vector<16xf32>
    %13 = vector.multi_reduction <add>, %12, %cst_7 [1] : vector<16x128xf32> to vector<16xf32>
    %14 = vector.shape_cast %13 : vector<16xf32> to vector<16x1xf32>
    %15 = arith.mulf %9, %9 : vector<16x1xf32>
    %cst_8 = arith.constant 9.600000e+01 : f32
    %16 = vector.broadcast %cst_8 : f32 to vector<16x1xf32>
    %17 = arith.mulf %16, %15 : vector<16x1xf32>
    %18 = arith.subf %14, %17 : vector<16x1xf32>
    %cst_9 = arith.constant 3.125000e-02 : f32
    %19 = vector.broadcast %cst_9 : f32 to vector<16x1xf32>
    %20 = arith.mulf %18, %19 : vector<16x1xf32>
    %cst_10 = arith.constant 9.99999974E-6 : f32
    %21 = vector.broadcast %cst_10 : f32 to vector<16x1xf32>
    %22 = arith.addf %20, %21 : vector<16x1xf32>
    %23 = math.rsqrt %22 : vector<16x1xf32>
    %24 = vector.broadcast %23 : vector<16x1xf32> to vector<16x128xf32>
    %25 = arith.mulf %11, %24 : vector<16x128xf32>
    %c0_11 = arith.constant 0 : index
    %c0_12 = arith.constant 0 : index
    %26 = vector.load %arg4[%c0_11, %c0_12] : memref<1x128xf32, #tpu.memory_space<vmem>>, vector<1x128xf32>
    %27 = vector.broadcast %26 : vector<1x128xf32> to vector<16x128xf32>
    %28 = arith.mulf %25, %27 : vector<16x128xf32>
    %c0_13 = arith.constant 0 : index
    %c0_14 = arith.constant 0 : index
    %29 = vector.load %arg5[%c0_13, %c0_14] : memref<1x128xf32, #tpu.memory_space<vmem>>, vector<1x128xf32>
    %30 = vector.broadcast %29 : vector<1x128xf32> to vector<16x128xf32>
    %31 = arith.addf %28, %30 : vector<16x128xf32>
    %32 = arith.truncf %31 : vector<16x128xf32> to vector<16x128xbf16>
    %c0_15 = arith.constant 0 : index
    %c0_16 = arith.constant 0 : index
    %33 = vector.load %arg6[%c0_15, %c0_16] : memref<128x128xbf16, #tpu.memory_space<vmem>>, vector<128x128xbf16>
    %cst_17 = arith.constant dense<0.000000e+00> : vector<16x128xf32>
    %34 = tpu.matmul %32, %33, %cst_17 {dimension_numbers = #tpu.dot_dimension_numbers<[1], [0], [0], [1], [0, 0, 1, 1], [], []>} : vector<16x128xbf16>, vector<128x128xbf16>, vector<16x128xf32> -> vector<16x128xf32>
    %c0_18 = arith.constant 0 : index
    %c0_19 = arith.constant 0 : index
    %35 = vector.load %arg7[%c0_18, %c0_19] : memref<1x128xf32, #tpu.memory_space<vmem>>, vector<1x128xf32>
    %36 = vector.broadcast %35 : vector<1x128xf32> to vector<16x128xf32>
    %37 = arith.addf %34, %36 : vector<16x128xf32>
    %c0_20 = arith.constant 0 : index
    %c0_21 = arith.constant 0 : index
    %38 = vector.load %arg8[%c0_20, %c0_21] : memref<16x128xf32, #tpu.memory_space<vmem>>, vector<16x128xf32>
    tpu.vector_store %arg8[%c0_20, %c0_21], %37 {strides = array<i32>} : memref<16x128xf32, #tpu.memory_space<vmem>>, vector<16x128xf32>,
    return
  }
  func.func @transform_0(%arg0: i32) -> (i32, i32) {
    %c0_i32 = arith.constant 0 : i32
    %c0_i32_0 = arith.constant 0 : i32
    return %arg0, %c0_i32 : i32, i32
  }
  func.func @transform_1(%arg0: i32) -> (i32, i32) {
    %c0_i32 = arith.constant 0 : i32
    %c0_i32_0 = arith.constant 0 : i32
    %c0_i32_1 = arith.constant 0 : i32
    return %c0_i32, %c0_i32_0 : i32, i32
  }
  func.func @transform_2(%arg0: i32) -> (i32, i32) {
    %c0_i32 = arith.constant 0 : i32
    %c0_i32_0 = arith.constant 0 : i32
    %c0_i32_1 = arith.constant 0 : i32
    return %c0_i32, %c0_i32_0 : i32, i32
  }
  func.func @transform_3(%arg0: i32) -> (i32, i32) {
    %c0_i32 = arith.constant 0 : i32
    %c0_i32_0 = arith.constant 0 : i32
    %c0_i32_1 = arith.constant 0 : i32
    return %c0_i32, %c0_i32_0 : i32, i32
  }
  func.func @transform_4(%arg0: i32) -> (i32, i32) {
    %c0_i32 = arith.constant 0 : i32
    %c0_i32_0 = arith.constant 0 : i32
    %c0_i32_1 = arith.constant 0 : i32
    return %c0_i32, %c0_i32_0 : i32, i32
  }
  func.func @transform_5(%arg0: i32) -> (i32, i32) {
    %c0_i32 = arith.constant 0 : i32
    %c0_i32_0 = arith.constant 0 : i32
    %c0_i32_1 = arith.constant 0 : i32
    return %c0_i32, %c0_i32_0 : i32, i32
  }
  func.func @transform_6(%arg0: i32) -> (i32, i32) {
    %c0_i32 = arith.constant 0 : i32
    %c0_i32_0 = arith.constant 0 : i32
    %c0_i32_1 = arith.constant 0 : i32
    return %c0_i32, %c0_i32_0 : i32, i32
  }
  func.func @transform_7(%arg0: i32) -> (i32, i32) {
    %c0_i32 = arith.constant 0 : i32
    %c0_i32_0 = arith.constant 0 : i32
    return %arg0, %c0_i32 : i32, i32
  }
}

</mosaic_0001>

<llo_original>
// kernel: tpu_custom_call.1
$region0: #{tpu_custom_call.1}
  #allocation0 [shape = 'u32[]', space=smem, size = 0x4, offset = 0x4, fixed_abs, tag = 'smem constant byte address 0x4 - core index']
  #allocation1 [shape = 'u32[144,128]{1,0:T(1,128)}', space=vmem, size = 0x12000, scoped, tag = 'internal scratch']
  %s0 = inlined_call_operand.hbm [shape: bf16[16,128], index: 0, kind: input, shape index: {}]
  %s1 = inlined_call_operand.hbm [shape: bf16[128,128], index: 1, kind: input, shape index: {}]
  %s2 = inlined_call_operand.vmem [shape: f32[1,128], index: 2, kind: input, shape index: {}]
  %s3 = inlined_call_operand.vmem [shape: f32[1,128], index: 3, kind: input, shape index: {}]
  %s4 = inlined_call_operand.vmem [shape: f32[1,128], index: 4, kind: input, shape index: {}]
  %s5 = inlined_call_operand.hbm [shape: bf16[128,128], index: 5, kind: input, shape index: {}]
  %s6 = inlined_call_operand.vmem [shape: f32[1,128], index: 6, kind: input, shape index: {}]
  %s7 = inlined_call_operand.hbm [shape: f32[16,128], index: 7, kind: output, shape index: {}]
  %s8 = sld [smem:[#allocation0]]
  $region50: #{tpu_custom_call.1} parent=0
    _
  %s10 = ssub.s32 1, %s8
  %s11 = scalar_select 0, %s10, %s8
  $region1: #{tpu_custom_call.1} parent=0
    #allocation2 [shape = 'u8[4096]{0}', space=vmem, size = 0x1000, scoped, tag = 'input window, operand 0, single buffered']
    #allocation3 [shape = 's32[1]{0}', space=sflag, size = 0x4, scoped, tag = 'scoped memory for tpu_custom_call.1']
    #allocation4 [shape = 's32[1]{0}', space=sflag, size = 0x4, scoped, tag = 'scoped memory for tpu_custom_call.1']
    #allocation5 [shape = 'u8[32768]{0}', space=vmem, size = 0x8000, scoped, tag = 'input window, operand 1, single buffered']
    #allocation6 [shape = 's32[1]{0}', space=sflag, size = 0x4, scoped, tag = 'scoped memory for tpu_custom_call.1']
    #allocation7 [shape = 'u8[32768]{0}', space=vmem, size = 0x8000, scoped, tag = 'input window, operand 5, single buffered']
    #allocation8 [shape = 'u8[8192]{0}', space=vmem, size = 0x2000, scoped, tag = 'output window, operand 0, single buffered']
    %12 = vsyncpa [#allocation3], 0
    %13 = vsyncpa [#allocation6], 0
    %14 = vsyncpa [#allocation4], 0
    // Predicated region
    $region2: #{tpu_custom_call.1} parent=1 // pred_check
      _
    $region3: #{tpu_custom_call.1} parent=1 // pred_check_branch
      %16 = sbr.rel (0) target = $region5
    $region4: #{tpu_custom_call.1} parent=1 // pred_region
      %s18 = ssub.s32 128, 128
      %19 = vsyncadd [#allocation3], %s18
      %s20 = sshll.u32 [#allocation2], 4
      %s21 = int_to_ptr.vmem [resolvable:$true] %s20
      %26 = dma.hbm_to_vmem [thread:$0]  %s0, 128, %s21, [#allocation3], 64, 64, 4
    $region5: #{tpu_custom_call.1} parent=1 // pred_fallthru
      _
    // Predicated region
    $region6: #{tpu_custom_call.1} parent=1 // pred_check
      _
    $region7: #{tpu_custom_call.1} parent=1 // pred_check_branch
      %28 = sbr.rel (0) target = $region9
    $region8: #{tpu_custom_call.1} parent=1 // pred_region
      %s30 = ssub.s32 1024, 1024
      %31 = vsyncadd [#allocation6], %s30
      %s32 = sshll.u32 [#allocation5], 4
      %s33 = int_to_ptr.vmem [resolvable:$true] %s32
      %38 = dma.hbm_to_vmem [thread:$0]  %s1, 1024, %s33, [#allocation6], 64, 64, 4
    $region9: #{tpu_custom_call.1} parent=1 // pred_fallthru
      _
    // Predicated region
    $region10: #{tpu_custom_call.1} parent=1 // pred_check
      _
    $region11: #{tpu_custom_call.1} parent=1 // pred_check_branch
      %40 = sbr.rel (0) target = $region13
    $region12: #{tpu_custom_call.1} parent=1 // pred_region
      _
    $region13: #{tpu_custom_call.1} parent=1 // pred_fallthru
      _
    // Predicated region
    $region14: #{tpu_custom_call.1} parent=1 // pred_check
      _
    $region15: #{tpu_custom_call.1} parent=1 // pred_check_branch
      %42 = sbr.rel (0) target = $region17
    $region16: #{tpu_custom_call.1} parent=1 // pred_region
      _
    $region17: #{tpu_custom_call.1} parent=1 // pred_fallthru
      _
    // Predicated region
    $region18: #{tpu_custom_call.1} parent=1 // pred_check
      _
    $region19: #{tpu_custom_call.1} parent=1 // pred_check_branch
      %44 = sbr.rel (0) target = $region21
    $region20: #{tpu_custom_call.1} parent=1 // pred_region
      _
    $region21: #{tpu_custom_call.1} parent=1 // pred_fallthru
      _
    // Predicated region
    $region22: #{tpu_custom_call.1} parent=1 // pred_check
      _
    $region23: #{tpu_custom_call.1} parent=1 // pred_check_branch
      %46 = sbr.rel (0) target = $region25
    $region24: #{tpu_custom_call.1} parent=1 // pred_region
      %s48 = ssub.s32 1024, 1024
      %49 = vsyncadd [#allocation6], %s48
      %s50 = sshll.u32 [#allocation7], 4
      %s51 = int_to_ptr.vmem [resolvable:$true] %s50
      %56 = dma.hbm_to_vmem [thread:$0]  %s5, 1024, %s51, [#allocation6], 64, 64, 4
    $region25: #{tpu_custom_call.1} parent=1 // pred_fallthru
      _
    // Predicated region
    $region26: #{tpu_custom_call.1} parent=1 // pred_check
      _
    $region27: #{tpu_custom_call.1} parent=1 // pred_check_branch
      %58 = sbr.rel (0) target = $region29
    $region28: #{tpu_custom_call.1} parent=1 // pred_region
      _
    $region29: #{tpu_custom_call.1} parent=1 // pred_fallthru
      _
    // Predicated region
    $region30: #{tpu_custom_call.1} parent=1 // pred_check
      _
    $region31: #{tpu_custom_call.1} parent=1 // pred_check_branch
      %60 = sbr.rel (0) target = $region33
    $region32: #{tpu_custom_call.1} parent=1 // pred_region
      %61 = dma.done [#allocation3], 128
    $region33: #{tpu_custom_call.1} parent=1 // pred_fallthru
      _
    // Predicated region
    $region34: #{tpu_custom_call.1} parent=1 // pred_check
      _
    $region35: #{tpu_custom_call.1} parent=1 // pred_check_branch
      %63 = sbr.rel (0) target = $region37
    $region36: #{tpu_custom_call.1} parent=1 // pred_region
      %64 = dma.done [#allocation6], 1024
    $region37: #{tpu_custom_call.1} parent=1 // pred_fallthru
      _
    // Predicated region
    $region38: #{tpu_custom_call.1} parent=1 // pred_check
      _
    $region39: #{tpu_custom_call.1} parent=1 // pred_check_branch
      %66 = sbr.rel (0) target = $region41
    $region40: #{tpu_custom_call.1} parent=1 // pred_region
      %67 = dma.done [#allocation6], 1024
    $region41: #{tpu_custom_call.1} parent=1 // pred_fallthru
      _
    %v69 = vld [vmem:[#allocation2] sm:$0xf]
    %v70 = vld [vmem:[#allocation2 + $0x4] sm:$0xf]
    %v71 = vld [vmem:[#allocation5] sm:$0xf]
    %v72 = vld [vmem:[#allocation5 + $0x4] sm:$0xf]
    %v73 = vld [vmem:[#allocation5 + $0x8] sm:$0xf]
    %v74 = vld [vmem:[#allocation5 + $0xc] sm:$0xf]
    %v75 = vld [vmem:[#allocation5 + $0x10] sm:$0xf]
    %v76 = vld [vmem:[#allocation5 + $0x14] sm:$0xf]
    %v77 = vld [vmem:[#allocation5 + $0x18] sm:$0xf]
    %v78 = vld [vmem:[#allocation5 + $0x1c] sm:$0xf]
    %v79 = vld [vmem:[#allocation5 + $0x20] sm:$0xf]
    %v80 = vld [vmem:[#allocation5 + $0x24] sm:$0xf]
    %v81 = vld [vmem:[#allocation5 + $0x28] sm:$0xf]
    %v82 = vld [vmem:[#allocation5 + $0x2c] sm:$0xf]
    %v83 = vld [vmem:[#allocation5 + $0x30] sm:$0xf]
    %v84 = vld [vmem:[#allocation5 + $0x34] sm:$0xf]
    %v85 = vld [vmem:[#allocation5 + $0x38] sm:$0xf]
    %v86 = vld [vmem:[#allocation5 + $0x3c] sm:$0xf]
    %v87 = vld [vmem:[%s2] sm:$0x1]
    %v89 = vlaneseq
    %v90 = vshrl.u32 %v89, 7
    %v91 = vsub.s32 0, %v90
    %v92 = vrot.slane %v87, %v91
    %v96 = vunpack.c.l.b16 %v69
    %v97 = vunpack.c.l.b16 %v70
    %v98 = vpack.c.b16 %v97, %v96
    %v116 = vunpack.c.l.b16 %v71
    %v117 = vunpack.c.l.b16 %v72
    %v118 = vunpack.c.l.b16 %v73
    %v119 = vunpack.c.l.b16 %v74
    %v120 = vunpack.c.l.b16 %v75
    %v121 = vunpack.c.l.b16 %v76
    %v122 = vunpack.c.l.b16 %v77
    %v123 = vunpack.c.l.b16 %v78
    %v124 = vunpack.c.l.b16 %v79
    %v125 = vunpack.c.l.b16 %v80
    %v126 = vunpack.c.l.b16 %v81
    %v127 = vunpack.c.l.b16 %v82
    %v128 = vunpack.c.l.b16 %v83
    %v129 = vunpack.c.l.b16 %v84
    %v130 = vunpack.c.l.b16 %v85
    %v131 = vunpack.c.l.b16 %v86
    %v132 = vpack.c.b16 %v117, %v116
    %v133 = vpack.c.b16 %v119, %v118
    %v134 = vpack.c.b16 %v121, %v120
    %v135 = vpack.c.b16 %v123, %v122
    %v136 = vpack.c.b16 %v125, %v124
    %v137 = vpack.c.b16 %v127, %v126
    %v138 = vpack.c.b16 %v129, %v128
    %v139 = vpack.c.b16 %v131, %v130
    %148 = vmatprep.subr.bf16.mxu0 0
    %149 = vmatpush1.bf16.msra.mxu0 %v132
    %150 = vmatprep.subr.bf16.mxu0 0
    %151 = vmatpush1.bf16.msra.mxu0 %v133
    %152 = vmatprep.subr.bf16.mxu0 0
    %153 = vmatpush1.bf16.msra.mxu0 %v134
    %154 = vmatprep.subr.bf16.mxu0 0
    %155 = vmatpush1.bf16.msra.mxu0 %v135
    %156 = vmatprep.subr.bf16.mxu0 0
    %157 = vmatpush1.bf16.msra.mxu0 %v136
    %158 = vmatprep.subr.bf16.mxu0 0
    %159 = vmatpush1.bf16.msra.mxu0 %v137
    %160 = vmatprep.subr.bf16.mxu0 0
    %161 = vmatpush1.bf16.msra.mxu0 %v138
    %162 = vmatprep.subr.bf16.mxu0 0
    %163 = vmatpush1.bf16.msra.mxu0 %v139
    %164 = vmatprep.subr.bf16.mxu0 0
    %165 = vmatpush1.bf16.msra.mxu0 0
    %166 = vmatprep.subr.bf16.mxu0 0
    %167 = vmatpush1.bf16.msra.mxu0 0
    %168 = vmatprep.subr.bf16.mxu0 0
    %169 = vmatpush1.bf16.msra.mxu0 0
    %170 = vmatprep.subr.bf16.mxu0 0
    %171 = vmatpush1.bf16.msra.mxu0 0
    %172 = vmatprep.subr.bf16.mxu0 0
    %173 = vmatpush1.bf16.msra.mxu0 0
    %174 = vmatprep.subr.bf16.mxu0 0
    %175 = vmatpush1.bf16.msra.mxu0 0
    %176 = vmatprep.subr.bf16.mxu0 0
    %177 = vmatpush1.bf16.msra.mxu0 0
    %178 = vmatprep.subr.bf16.mxu0 0
    %179 = vmatpush1.bf16.msra.mxu0 0
    %180 = vmatprep.mubr.bf16.mxu0 0
    %181 = vmatmul.mubr.bf16.gmra.mrb[0].mxu0 %v98
    %v182 = vpop.f32.mrb[0].mxu0
    %v183 = vadd.f32 %v92, %v182
    %v184 = vpop.f32.mrb[0].mxu0
    %v185 = vpop.f32.mrb[0].mxu0
    %v186 = vadd.f32 %v92, %v185
    %v187 = vpop.f32.mrb[0].mxu0
    %188 = vdwg.mxu0
    %189 = vadd.xlane.f32.xlu0 %v183
    %v190 = vpop.xlane.xlu0 %189
    %191 = vadd.xlane.f32.xlu0 %v186
    %v192 = vpop.xlane.xlu0 %191
    %v193 = vmul.f32 %v190, 0.03125
    %v194 = vmul.f32 %v192, 0.03125
    %v195 = vsub.f32 %v183, %v193
    %v196 = vsub.f32 %v186, %v194
    %v197 = vmul.f32 %v195, %v195
    %v198 = vmul.f32 %v196, %v196
    %199 = vadd.xlane.f32.xlu0 %v197
    %v200 = vpop.xlane.xlu0 %199
    %201 = vadd.xlane.f32.xlu0 %v198
    %v202 = vpop.xlane.xlu0 %201
    %v203 = vmul.f32 %v193, %v193
    %v204 = vmul.f32 %v194, %v194
    %v205 = vmul.f32 %v203, 96.0
    %v206 = vmul.f32 %v204, 96.0
    %v207 = vsub.f32 %v200, %v205
    %v208 = vsub.f32 %v202, %v206
    %v209 = vmul.f32 %v207, 0.03125
    %v210 = vmul.f32 %v208, 0.03125
    %v211 = vadd.f32 %v209, 1e-05
    %v212 = vadd.f32 %v210, 1e-05
    %v213 = vrsqrt.pop %v211
    %v214 = vrsqrt.pop %v212
    %v215 = vmul.f32 %v195, %v213
    %v216 = vmul.f32 %v196, %v214
    %v217 = vld [vmem:[%s3] sm:$0x1]
    %v219 = vlaneseq
    %v220 = vshrl.u32 %v219, 7
    %v221 = vsub.s32 0, %v220
    %v222 = vrot.slane %v217, %v221
    %v224 = vmul.f32 %v215, %v222
    %v225 = vmul.f32 %v216, %v222
    %v226 = vld [vmem:[%s4] sm:$0x1]
    %v228 = vlaneseq
    %v229 = vshrl.u32 %v228, 7
    %v230 = vsub.s32 0, %v229
    %v231 = vrot.slane %v226, %v230
    %v233 = vadd.f32 %v224, %v231
    %v234 = vadd.f32 %v225, %v231
    %v235 = vpack.c.bf16 %v234, %v233
    %v236 = vld [vmem:[#allocation7] sm:$0xf]
    %v237 = vld [vmem:[#allocation7 + $0x4] sm:$0xf]
    %v238 = vld [vmem:[#allocation7 + $0x8] sm:$0xf]
    %v239 = vld [vmem:[#allocation7 + $0xc] sm:$0xf]
    %v240 = vld [vmem:[#allocation7 + $0x10] sm:$0xf]
    %v241 = vld [vmem:[#allocation7 + $0x14] sm:$0xf]
    %v242 = vld [vmem:[#allocation7 + $0x18] sm:$0xf]
    %v243 = vld [vmem:[#allocation7 + $0x1c] sm:$0xf]
    %v244 = vld [vmem:[#allocation7 + $0x20] sm:$0xf]
    %v245 = vld [vmem:[#allocation7 + $0x24] sm:$0xf]
    %v246 = vld [vmem:[#allocation7 + $0x28] sm:$0xf]
    %v247 = vld [vmem:[#allocation7 + $0x2c] sm:$0xf]
    %v248 = vld [vmem:[#allocation7 + $0x30] sm:$0xf]
    %v249 = vld [vmem:[#allocation7 + $0x34] sm:$0xf]
    %v250 = vld [vmem:[#allocation7 + $0x38] sm:$0xf]
    %v251 = vld [vmem:[#allocation7 + $0x3c] sm:$0xf]
    %v252 = vld [vmem:[%s6] sm:$0x1]
    %v254 = vlaneseq
    %v255 = vshrl.u32 %v254, 7
    %v256 = vsub.s32 0, %v255
    %v257 = vrot.slane %v252, %v256
    %v275 = vunpack.c.l.b16 %v236
    %v276 = vunpack.c.l.b16 %v237
    %v277 = vunpack.c.l.b16 %v238
    %v278 = vunpack.c.l.b16 %v239
    %v279 = vunpack.c.l.b16 %v240
    %v280 = vunpack.c.l.b16 %v241
    %v281 = vunpack.c.l.b16 %v242
    %v282 = vunpack.c.l.b16 %v243
    %v283 = vunpack.c.l.b16 %v244
    %v284 = vunpack.c.l.b16 %v245
    %v285 = vunpack.c.l.b16 %v246
    %v286 = vunpack.c.l.b16 %v247
    %v287 = vunpack.c.l.b16 %v248
    %v288 = vunpack.c.l.b16 %v249
    %v289 = vunpack.c.l.b16 %v250
    %v290 = vunpack.c.l.b16 %v251
    %v291 = vpack.c.b16 %v276, %v275
    %v292 = vpack.c.b16 %v278, %v277
    %v293 = vpack.c.b16 %v280, %v279
    %v294 = vpack.c.b16 %v282, %v281
    %v295 = vpack.c.b16 %v284, %v283
    %v296 = vpack.c.b16 %v286, %v285
    %v297 = vpack.c.b16 %v288, %v287
    %v298 = vpack.c.b16 %v290, %v289
    %307 = vmatprep.subr.bf16.mxu0 0
    %308 = vmatpush1.bf16.msra.mxu0 %v291
    %309 = vmatprep.subr.bf16.mxu0 0
    %310 = vmatpush1.bf16.msra.mxu0 %v292
    %311 = vmatprep.subr.bf16.mxu0 0
    %312 = vmatpush1.bf16.msra.mxu0 %v293
    %313 = vmatprep.subr.bf16.mxu0 0
    %314 = vmatpush1.bf16.msra.mxu0 %v294
    %315 = vmatprep.subr.bf16.mxu0 0
    %316 = vmatpush1.bf16.msra.mxu0 %v295
    %317 = vmatprep.subr.bf16.mxu0 0
    %318 = vmatpush1.bf16.msra.mxu0 %v296
    %319 = vmatprep.subr.bf16.mxu0 0
    %320 = vmatpush1.bf16.msra.mxu0 %v297
    %321 = vmatprep.subr.bf16.mxu0 0
    %322 = vmatpush1.bf16.msra.mxu0 %v298
    %323 = vmatprep.subr.bf16.mxu0 0
    %324 = vmatpush1.bf16.msra.mxu0 0
    %325 = vmatprep.subr.bf16.mxu0 0
    %326 = vmatpush1.bf16.msra.mxu0 0
    %327 = vmatprep.subr.bf16.mxu0 0
    %328 = vmatpush1.bf16.msra.mxu0 0
    %329 = vmatprep.subr.bf16.mxu0 0
    %330 = vmatpush1.bf16.msra.mxu0 0
    %331 = vmatprep.subr.bf16.mxu0 0
    %332 = vmatpush1.bf16.msra.mxu0 0
    %333 = vmatprep.subr.bf16.mxu0 0
    %334 = vmatpush1.bf16.msra.mxu0 0
    %335 = vmatprep.subr.bf16.mxu0 0
    %336 = vmatpush1.bf16.msra.mxu0 0
    %337 = vmatprep.subr.bf16.mxu0 0
    %338 = vmatpush1.bf16.msra.mxu0 0
    %339 = vmatprep.mubr.bf16.mxu0 0
    %340 = vmatmul.mubr.bf16.gmra.mrb[0].mxu0 %v235
    %v341 = vpop.f32.mrb[0].mxu0
    %v342 = vadd.f32 %v257, %v341
    %v343 = vpop.f32.mrb[0].mxu0
    %v344 = vpop.f32.mrb[0].mxu0
    %v345 = vadd.f32 %v257, %v344
    %v346 = vpop.f32.mrb[0].mxu0
    %347 = vdwg.mxu0
    %348 = vst [vmem:[#allocation8] sm:$0xff] %v342
    %349 = vst [vmem:[#allocation8 + $0x8] sm:$0xff] %v345
    // Predicated region
    $region42: #{tpu_custom_call.1} parent=1 // pred_check
      _
    $region43: #{tpu_custom_call.1} parent=1 // pred_check_branch
      %351 = sbr.rel (0) target = $region45
    $region44: #{tpu_custom_call.1} parent=1 // pred_region
      %s353 = ssub.s32 256, 256
      %354 = vsyncadd [#allocation4], %s353
      %s355 = sshll.u32 [#allocation8], 4
      %s356 = int_to_ptr.vmem [resolvable:$true] %s355
      %361 = dma.vmem_to_hbm [thread:$0]  %s356, 256, %s7, [#allocation4], 128, 128, 8
    $region45: #{tpu_custom_call.1} parent=1 // pred_fallthru
      _
    // Predicated region
    $region46: #{tpu_custom_call.1} parent=1 // pred_check
      _
    $region47: #{tpu_custom_call.1} parent=1 // pred_check_branch
      %363 = sbr.rel (0) target = $region49
    $region48: #{tpu_custom_call.1} parent=1 // pred_region
      %364 = dma.done [#allocation4], 256
    $region49: #{tpu_custom_call.1} parent=1 // pred_fallthru
      _
    %365 = vsyncpa [#allocation3], 1
    %366 = vsyncpa [#allocation6], 1
    %367 = vsyncpa [#allocation4], 1

// kernel: tpu_custom_call.1
$region0: #{tpu_custom_call.1}
  #allocation0 [shape = 'u32[]', space=smem, size = 0x4, offset = 0x4, fixed_abs, tag = 'smem constant byte address 0x4 - core index']
  #allocation1 [shape = 'u32[144,128]{1,0:T(1,128)}', space=vmem, size = 0x12000, scoped, tag = 'internal scratch']
  %s0 = inlined_call_operand.hbm [shape: bf16[16,128], index: 0, kind: input, shape index: {}]
  %s1 = inlined_call_operand.hbm [shape: bf16[128,128], index: 1, kind: input, shape index: {}]
  %s2 = inlined_call_operand.vmem [shape: f32[1,128], index: 2, kind: input, shape index: {}]
  %s3 = inlined_call_operand.vmem [shape: f32[1,128], index: 3, kind: input, shape index: {}]
  %s4 = inlined_call_operand.vmem [shape: f32[1,128], index: 4, kind: input, shape index: {}]
  %s5 = inlined_call_operand.hbm [shape: bf16[128,128], index: 5, kind: input, shape index: {}]
  %s6 = inlined_call_operand.vmem [shape: f32[1,128], index: 6, kind: input, shape index: {}]
  %s7 = inlined_call_operand.hbm [shape: f32[16,128], index: 7, kind: output, shape index: {}]
  %s8 = sld [smem:[#allocation0]]
  $region50: #{tpu_custom_call.1} parent=0
    _
  %s10 = ssub.s32 1, %s8
  %s11 = scalar_select 0, %s10, %s8
  $region1: #{tpu_custom_call.1} parent=0
    #allocation2 [shape = 'u8[4096]{0}', space=vmem, size = 0x1000, scoped, tag = 'input window, operand 0, single buffered']
    #allocation3 [shape = 's32[1]{0}', space=sflag, size = 0x4, scoped, tag = 'scoped memory for tpu_custom_call.1']
    #allocation4 [shape = 's32[1]{0}', space=sflag, size = 0x4, scoped, tag = 'scoped memory for tpu_custom_call.1']
    #allocation5 [shape = 'u8[32768]{0}', space=vmem, size = 0x8000, scoped, tag = 'input window, operand 1, single buffered']
    #allocation6 [shape = 's32[1]{0}', space=sflag, size = 0x4, scoped, tag = 'scoped memory for tpu_custom_call.1']
    #allocation7 [shape = 'u8[32768]{0}', space=vmem, size = 0x8000, scoped, tag = 'input window, operand 5, single buffered']
    #allocation8 [shape = 'u8[8192]{0}', space=vmem, size = 0x2000, scoped, tag = 'output window, operand 0, single buffered']
    %12 = vsyncpa [#allocation3], 0
    %13 = vsyncpa [#allocation6], 0
    %14 = vsyncpa [#allocation4], 0
    // Predicated region
    $region2: #{tpu_custom_call.1} parent=1 // pred_check
      _
    $region3: #{tpu_custom_call.1} parent=1 // pred_check_branch
      %16 = sbr.rel (0) target = $region5
    $region4: #{tpu_custom_call.1} parent=1 // pred_region
      %s18 = ssub.s32 128, 128
      %19 = vsyncadd [#allocation3], %s18
      %s20 = sshll.u32 [#allocation2], 4
      %s21 = int_to_ptr.vmem [resolvable:$true] %s20
      %26 = dma.hbm_to_vmem [thread:$0]  %s0, 128, %s21, [#allocation3], 64, 64, 4
    $region5: #{tpu_custom_call.1} parent=1 // pred_fallthru
      _
    // Predicated region
    $region6: #{tpu_custom_call.1} parent=1 // pred_check
      _
    $region7: #{tpu_custom_call.1} parent=1 // pred_check_branch
      %28 = sbr.rel (0) target = $region9
    $region8: #{tpu_custom_call.1} parent=1 // pred_region
      %s30 = ssub.s32 1024, 1024
      %31 = vsyncadd [#allocation6], %s30
      %s32 = sshll.u32 [#allocation5], 4
      %s33 = int_to_ptr.vmem [resolvable:$true] %s32
      %38 = dma.hbm_to_vmem [thread:$0]  %s1, 1024, %s33, [#allocation6], 64, 64, 4
    $region9: #{tpu_custom_call.1} parent=1 // pred_fallthru
      _
    // Predicated region
    $region10: #{tpu_custom_call.1} parent=1 // pred_check
      _
    $region11: #{tpu_custom_call.1} parent=1 // pred_check_branch
      %40 = sbr.rel (0) target = $region13
    $region12: #{tpu_custom_call.1} parent=1 // pred_region
      _
    $region13: #{tpu_custom_call.1} parent=1 // pred_fallthru
      _
    // Predicated region
    $region14: #{tpu_custom_call.1} parent=1 // pred_check
      _
    $region15: #{tpu_custom_call.1} parent=1 // pred_check_branch
      %42 = sbr.rel (0) target = $region17
    $region16: #{tpu_custom_call.1} parent=1 // pred_region
      _
    $region17: #{tpu_custom_call.1} parent=1 // pred_fallthru
      _
    // Predicated region
    $region18: #{tpu_custom_call.1} parent=1 // pred_check
      _
    $region19: #{tpu_custom_call.1} parent=1 // pred_check_branch
      %44 = sbr.rel (0) target = $region21
    $region20: #{tpu_custom_call.1} parent=1 // pred_region
      _
    $region21: #{tpu_custom_call.1} parent=1 // pred_fallthru
      _
    // Predicated region
    $region22: #{tpu_custom_call.1} parent=1 // pred_check
      _
    $region23: #{tpu_custom_call.1} parent=1 // pred_check_branch
      %46 = sbr.rel (0) target = $region25
    $region24: #{tpu_custom_call.1} parent=1 // pred_region
      %s48 = ssub.s32 1024, 1024
      %49 = vsyncadd [#allocation6], %s48
      %s50 = sshll.u32 [#allocation7], 4
      %s51 = int_to_ptr.vmem [resolvable:$true] %s50
      %56 = dma.hbm_to_vmem [thread:$0]  %s5, 1024, %s51, [#allocation6], 64, 64, 4
    $region25: #{tpu_custom_call.1} parent=1 // pred_fallthru
      _
    // Predicated region
    $region26: #{tpu_custom_call.1} parent=1 // pred_check
      _
    $region27: #{tpu_custom_call.1} parent=1 // pred_check_branch
      %58 = sbr.rel (0) target = $region29
    $region28: #{tpu_custom_call.1} parent=1 // pred_region
      _
    $region29: #{tpu_custom_call.1} parent=1 // pred_fallthru
      _
    // Predicated region
    $region30: #{tpu_custom_call.1} parent=1 // pred_check
      _
    $region31: #{tpu_custom_call.1} parent=1 // pred_check_branch
      %60 = sbr.rel (0) target = $region33
    $region32: #{tpu_custom_call.1} parent=1 // pred_region
      %61 = dma.done [#allocation3], 128
    $region33: #{tpu_custom_call.1} parent=1 // pred_fallthru
      _
    // Predicated region
    $region34: #{tpu_custom_call.1} parent=1 // pred_check
      _
    $region35: #{tpu_custom_call.1} parent=1 // pred_check_branch
      %63 = sbr.rel (0) target = $region37
    $region36: #{tpu_custom_call.1} parent=1 // pred_region
      %64 = dma.done [#allocation6], 1024
    $region37: #{tpu_custom_call.1} parent=1 // pred_fallthru
      _
    // Predicated region
    $region38: #{tpu_custom_call.1} parent=1 // pred_check
      _
    $region39: #{tpu_custom_call.1} parent=1 // pred_check_branch
      %66 = sbr.rel (0) target = $region41
    $region40: #{tpu_custom_call.1} parent=1 // pred_region
      %67 = dma.done [#allocation6], 1024
    $region41: #{tpu_custom_call.1} parent=1 // pred_fallthru
      _
    %v69 = vld [vmem:[#allocation2] sm:$0xf]
    %v70 = vld [vmem:[#allocation2 + $0x4] sm:$0xf]
    %v71 = vld [vmem:[#allocation5] sm:$0xf]
    %v72 = vld [vmem:[#allocation5 + $0x4] sm:$0xf]
    %v73 = vld [vmem:[#allocation5 + $0x8] sm:$0xf]
    %v74 = vld [vmem:[#allocation5 + $0xc] sm:$0xf]
    %v75 = vld [vmem:[#allocation5 + $0x10] sm:$0xf]
    %v76 = vld [vmem:[#allocation5 + $0x14] sm:$0xf]
    %v77 = vld [vmem:[#allocation5 + $0x18] sm:$0xf]
    %v78 = vld [vmem:[#allocation5 + $0x1c] sm:$0xf]
    %v79 = vld [vmem:[#allocation5 + $0x20] sm:$0xf]
    %v80 = vld [vmem:[#allocation5 + $0x24] sm:$0xf]
    %v81 = vld [vmem:[#allocation5 + $0x28] sm:$0xf]
    %v82 = vld [vmem:[#allocation5 + $0x2c] sm:$0xf]
    %v83 = vld [vmem:[#allocation5 + $0x30] sm:$0xf]
    %v84 = vld [vmem:[#allocation5 + $0x34] sm:$0xf]
    %v85 = vld [vmem:[#allocation5 + $0x38] sm:$0xf]
    %v86 = vld [vmem:[#allocation5 + $0x3c] sm:$0xf]
    %v87 = vld [vmem:[%s2] sm:$0x1]
    %v89 = vlaneseq
    %v90 = vshrl.u32 %v89, 7
    %v91 = vsub.s32 0, %v90
    %v92 = vrot.slane %v87, %v91
    %v96 = vunpack.c.l.b16 %v69
    %v97 = vunpack.c.l.b16 %v70
    %v98 = vpack.c.b16 %v97, %v96
    %v116 = vunpack.c.l.b16 %v71
    %v117 = vunpack.c.l.b16 %v72
    %v118 = vunpack.c.l.b16 %v73
    %v119 = vunpack.c.l.b16 %v74
    %v120 = vunpack.c.l.b16 %v75
    %v121 = vunpack.c.l.b16 %v76
    %v122 = vunpack.c.l.b16 %v77
    %v123 = vunpack.c.l.b16 %v78
    %v124 = vunpack.c.l.b16 %v79
    %v125 = vunpack.c.l.b16 %v80
    %v126 = vunpack.c.l.b16 %v81
    %v127 = vunpack.c.l.b16 %v82
    %v128 = vunpack.c.l.b16 %v83
    %v129 = vunpack.c.l.b16 %v84
    %v130 = vunpack.c.l.b16 %v85
    %v131 = vunpack.c.l.b16 %v86
    %v132 = vpack.c.b16 %v117, %v116
    %v133 = vpack.c.b16 %v119, %v118
    %v134 = vpack.c.b16 %v121, %v120
    %v135 = vpack.c.b16 %v123, %v122
    %v136 = vpack.c.b16 %v125, %v124
    %v137 = vpack.c.b16 %v127, %v126
    %v138 = vpack.c.b16 %v129, %v128
    %v139 = vpack.c.b16 %v131, %v130
    %148 = vmatprep.subr.bf16.mxu0 0
    %149 = vmatpush1.bf16.msra.mxu0 %v132
    %150 = vmatprep.subr.bf16.mxu0 0
    %151 = vmatpush1.bf16.msra.mxu0 %v133
    %152 = vmatprep.subr.bf16.mxu0 0
    %153 = vmatpush1.bf16.msra.mxu0 %v134
    %154 = vmatprep.subr.bf16.mxu0 0
    %155 = vmatpush1.bf16.msra.mxu0 %v135
    %156 = vmatprep.subr.bf16.mxu0 0
    %157 = vmatpush1.bf16.msra.mxu0 %v136
    %158 = vmatprep.subr.bf16.mxu0 0
    %159 = vmatpush1.bf16.msra.mxu0 %v137
    %160 = vmatprep.subr.bf16.mxu0 0
    %161 = vmatpush1.bf16.msra.mxu0 %v138
    %162 = vmatprep.subr.bf16.mxu0 0
    %163 = vmatpush1.bf16.msra.mxu0 %v139
    %164 = vmatprep.subr.bf16.mxu0 0
    %165 = vmatpush1.bf16.msra.mxu0 0
    %166 = vmatprep.subr.bf16.mxu0 0
    %167 = vmatpush1.bf16.msra.mxu0 0
    %168 = vmatprep.subr.bf16.mxu0 0
    %169 = vmatpush1.bf16.msra.mxu0 0
    %170 = vmatprep.subr.bf16.mxu0 0
    %171 = vmatpush1.bf16.msra.mxu0 0
    %172 = vmatprep.subr.bf16.mxu0 0
    %173 = vmatpush1.bf16.msra.mxu0 0
    %174 = vmatprep.subr.bf16.mxu0 0
    %175 = vmatpush1.bf16.msra.mxu0 0
    %176 = vmatprep.subr.bf16.mxu0 0
    %177 = vmatpush1.bf16.msra.mxu0 0
    %178 = vmatprep.subr.bf16.mxu0 0
    %179 = vmatpush1.bf16.msra.mxu0 0
    %180 = vmatprep.mubr.bf16.mxu0 0
    %181 = vmatmul.mubr.bf16.gmra.mrb[0].mxu0 %v98
    %v182 = vpop.f32.mrb[0].mxu0
    %v183 = vadd.f32 %v92, %v182
    %v184 = vpop.f32.mrb[0].mxu0
    %v185 = vpop.f32.mrb[0].mxu0
    %v186 = vadd.f32 %v92, %v185
    %v187 = vpop.f32.mrb[0].mxu0
    %188 = vdwg.mxu0
    %189 = vadd.xlane.f32.xlu0 %v183
    %v190 = vpop.xlane.xlu0 %189
    %191 = vadd.xlane.f32.xlu0 %v186
    %v192 = vpop.xlane.xlu0 %191
    %v193 = vmul.f32 %v190, 0.03125
    %v194 = vmul.f32 %v192, 0.03125
    %v195 = vsub.f32 %v183, %v193
    %v196 = vsub.f32 %v186, %v194
    %v197 = vmul.f32 %v195, %v195
    %v198 = vmul.f32 %v196, %v196
    %199 = vadd.xlane.f32.xlu0 %v197
    %v200 = vpop.xlane.xlu0 %199
    %201 = vadd.xlane.f32.xlu0 %v198
    %v202 = vpop.xlane.xlu0 %201
    %v203 = vmul.f32 %v193, %v193
    %v204 = vmul.f32 %v194, %v194
    %v205 = vmul.f32 %v203, 96.0
    %v206 = vmul.f32 %v204, 96.0
    %v207 = vsub.f32 %v200, %v205
    %v208 = vsub.f32 %v202, %v206
    %v209 = vmul.f32 %v207, 0.03125
    %v210 = vmul.f32 %v208, 0.03125
    %v211 = vadd.f32 %v209, 1e-05
    %v212 = vadd.f32 %v210, 1e-05
    %v213 = vrsqrt.pop %v211
    %v214 = vrsqrt.pop %v212
    %v215 = vmul.f32 %v195, %v213
    %v216 = vmul.f32 %v196, %v214
    %v217 = vld [vmem:[%s3] sm:$0x1]
    %v219 = vlaneseq
    %v220 = vshrl.u32 %v219, 7
    %v221 = vsub.s32 0, %v220
    %v222 = vrot.slane %v217, %v221
    %v224 = vmul.f32 %v215, %v222
    %v225 = vmul.f32 %v216, %v222
    %v226 = vld [vmem:[%s4] sm:$0x1]
    %v228 = vlaneseq
    %v229 = vshrl.u32 %v228, 7
    %v230 = vsub.s32 0, %v229
    %v231 = vrot.slane %v226, %v230
    %v233 = vadd.f32 %v224, %v231
    %v234 = vadd.f32 %v225, %v231
    %v235 = vpack.c.bf16 %v234, %v233
    %v236 = vld [vmem:[#allocation7] sm:$0xf]
    %v237 = vld [vmem:[#allocation7 + $0x4] sm:$0xf]
    %v238 = vld [vmem:[#allocation7 + $0x8] sm:$0xf]
    %v239 = vld [vmem:[#allocation7 + $0xc] sm:$0xf]
    %v240 = vld [vmem:[#allocation7 + $0x10] sm:$0xf]
    %v241 = vld [vmem:[#allocation7 + $0x14] sm:$0xf]
    %v242 = vld [vmem:[#allocation7 + $0x18] sm:$0xf]
    %v243 = vld [vmem:[#allocation7 + $0x1c] sm:$0xf]
    %v244 = vld [vmem:[#allocation7 + $0x20] sm:$0xf]
    %v245 = vld [vmem:[#allocation7 + $0x24] sm:$0xf]
    %v246 = vld [vmem:[#allocation7 + $0x28] sm:$0xf]
    %v247 = vld [vmem:[#allocation7 + $0x2c] sm:$0xf]
    %v248 = vld [vmem:[#allocation7 + $0x30] sm:$0xf]
    %v249 = vld [vmem:[#allocation7 + $0x34] sm:$0xf]
    %v250 = vld [vmem:[#allocation7 + $0x38] sm:$0xf]
    %v251 = vld [vmem:[#allocation7 + $0x3c] sm:$0xf]
    %v252 = vld [vmem:[%s6] sm:$0x1]
    %v254 = vlaneseq
    %v255 = vshrl.u32 %v254, 7
    %v256 = vsub.s32 0, %v255
    %v257 = vrot.slane %v252, %v256
    %v275 = vunpack.c.l.b16 %v236
    %v276 = vunpack.c.l.b16 %v237
    %v277 = vunpack.c.l.b16 %v238
    %v278 = vunpack.c.l.b16 %v239
    %v279 = vunpack.c.l.b16 %v240
    %v280 = vunpack.c.l.b16 %v241
    %v281 = vunpack.c.l.b16 %v242
    %v282 = vunpack.c.l.b16 %v243
    %v283 = vunpack.c.l.b16 %v244
    %v284 = vunpack.c.l.b16 %v245
    %v285 = vunpack.c.l.b16 %v246
    %v286 = vunpack.c.l.b16 %v247
    %v287 = vunpack.c.l.b16 %v248
    %v288 = vunpack.c.l.b16 %v249
    %v289 = vunpack.c.l.b16 %v250
    %v290 = vunpack.c.l.b16 %v251
    %v291 = vpack.c.b16 %v276, %v275
    %v292 = vpack.c.b16 %v278, %v277
    %v293 = vpack.c.b16 %v280, %v279
    %v294 = vpack.c.b16 %v282, %v281
    %v295 = vpack.c.b16 %v284, %v283
    %v296 = vpack.c.b16 %v286, %v285
    %v297 = vpack.c.b16 %v288, %v287
    %v298 = vpack.c.b16 %v290, %v289
    %307 = vmatprep.subr.bf16.mxu0 0
    %308 = vmatpush1.bf16.msra.mxu0 %v291
    %309 = vmatprep.subr.bf16.mxu0 0
    %310 = vmatpush1.bf16.msra.mxu0 %v292
    %311 = vmatprep.subr.bf16.mxu0 0
    %312 = vmatpush1.bf16.msra.mxu0 %v293
    %313 = vmatprep.subr.bf16.mxu0 0
    %314 = vmatpush1.bf16.msra.mxu0 %v294
    %315 = vmatprep.subr.bf16.mxu0 0
    %316 = vmatpush1.bf16.msra.mxu0 %v295
    %317 = vmatprep.subr.bf16.mxu0 0
    %318 = vmatpush1.bf16.msra.mxu0 %v296
    %319 = vmatprep.subr.bf16.mxu0 0
    %320 = vmatpush1.bf16.msra.mxu0 %v297
    %321 = vmatprep.subr.bf16.mxu0 0
    %322 = vmatpush1.bf16.msra.mxu0 %v298
    %323 = vmatprep.subr.bf16.mxu0 0
    %324 = vmatpush1.bf16.msra.mxu0 0
    %325 = vmatprep.subr.bf16.mxu0 0
    %326 = vmatpush1.bf16.msra.mxu0 0
    %327 = vmatprep.subr.bf16.mxu0 0
    %328 = vmatpush1.bf16.msra.mxu0 0
    %329 = vmatprep.subr.bf16.mxu0 0
    %330 = vmatpush1.bf16.msra.mxu0 0
    %331 = vmatprep.subr.bf16.mxu0 0
    %332 = vmatpush1.bf16.msra.mxu0 0
    %333 = vmatprep.subr.bf16.mxu0 0
    %334 = vmatpush1.bf16.msra.mxu0 0
    %335 = vmatprep.subr.bf16.mxu0 0
    %336 = vmatpush1.bf16.msra.mxu0 0
    %337 = vmatprep.subr.bf16.mxu0 0
    %338 = vmatpush1.bf16.msra.mxu0 0
    %339 = vmatprep.mubr.bf16.mxu0 0
    %340 = vmatmul.mubr.bf16.gmra.mrb[0].mxu0 %v235
    %v341 = vpop.f32.mrb[0].mxu0
    %v342 = vadd.f32 %v257, %v341
    %v343 = vpop.f32.mrb[0].mxu0
    %v344 = vpop.f32.mrb[0].mxu0
    %v345 = vadd.f32 %v257, %v344
    %v346 = vpop.f32.mrb[0].mxu0
    %347 = vdwg.mxu0
    %348 = vst [vmem:[#allocation8] sm:$0xff] %v342
    %349 = vst [vmem:[#allocation8 + $0x8] sm:$0xff] %v345
    // Predicated region
    $region42: #{tpu_custom_call.1} parent=1 // pred_check
      _
    $region43: #{tpu_custom_call.1} parent=1 // pred_check_branch
      %351 = sbr.rel (0) target = $region45
    $region44: #{tpu_custom_call.1} parent=1 // pred_region
      %s353 = ssub.s32 256, 256
      %354 = vsyncadd [#allocation4], %s353
      %s355 = sshll.u32 [#allocation8], 4
      %s356 = int_to_ptr.vmem [resolvable:$true] %s355
      %361 = dma.vmem_to_hbm [thread:$0]  %s356, 256, %s7, [#allocation4], 128, 128, 8
    $region45: #{tpu_custom_call.1} parent=1 // pred_fallthru
      _
    // Predicated region
    $region46: #{tpu_custom_call.1} parent=1 // pred_check
      _
    $region47: #{tpu_custom_call.1} parent=1 // pred_check_branch
      %363 = sbr.rel (0) target = $region49
    $region48: #{tpu_custom_call.1} parent=1 // pred_region
      %364 = dma.done [#allocation4], 256
    $region49: #{tpu_custom_call.1} parent=1 // pred_fallthru
      _
    %365 = vsyncpa [#allocation3], 1
    %366 = vsyncpa [#allocation6], 1
    %367 = vsyncpa [#allocation4], 1

</llo_original>
